<compile_context>
chip_gen: v7x
topology: tpu7x:2x2x1
jax: 0.10.0
libtpu: 0.0.40
codegen_flags: <defaults>
</compile_context>

<pallas_src>
import jax
import jax.numpy as jnp
from jax import lax
from jax.experimental import pallas as pl
from jax.experimental.pallas import tpu as pltpu

EPS = 1e-5


def up_kernel(x_ref, c1_ref, c2_ref, w_ref, gw_ref, out_ref):
    """Single invocation: all (F*B) rows at once, fully resident in VMEM.

    x_ref  : (BF, Cin)      frame-major rows (row = f_idx * B + b_idx)
    c1_ref : (2, BF, Cin)   [bn1 scale, bn1 shift]
    c2_ref : (3, BF, Cout)  [bn2 scale, bn2 shift (all biases folded), residual bias]
    w_ref  : (2, Cin, Cout) [W_fused (Linear->cat->kron(att,I3)), W_cat = [I | w_up^T]]
    gw_ref : (BF, BF)       kron(gw, I_B): frame mixing for the whole batch
    """
    # bn1 (eval) folded into a single affine FMA
    y = x_ref[...] * c1_ref[0] + c1_ref[1]                               # (BF, Cin)

    # fused Linear -> concat -> kron(att, I3); biases folded into bn2 shift
    g1 = jnp.dot(y, w_ref[0], preferred_element_type=jnp.float32)        # (BF, Cout)

    # residual cat(y, up) as one extra matmul -> single full-width store below
    res = jnp.dot(y, w_ref[1], preferred_element_type=jnp.float32)       # (BF, Cout)

    # frame mixing for all batch rows at once: kron(gw, I_B) @ g1
    g2 = jnp.dot(gw_ref[...], g1, preferred_element_type=jnp.float32)    # (BF, Cout)

    # bn2 (eval) affine + ReLU (+ Dropout = identity in eval) + residual, one store
    z = jnp.maximum(g2 * c2_ref[0] + c2_ref[1], 0.0)
    out_ref[...] = z + res + c2_ref[2]


def prepare_params(params, frame, batch, input_size):
    """Input-independent parameter fusion. Compute once; reuse across forward calls."""
    f, b, cin = frame, batch, input_size
    cout = cin + 3
    bf = f * b
    node = params["Ap"].shape[0]
    assert cout == 3 * node
    hp = lax.Precision.HIGHEST

    att = params["Ap"] * params["M"] + params["Q"]                       # (node, node)
    a_big = jnp.kron(att, jnp.eye(3, dtype=jnp.float32))                 # (Cout, Cout)
    w_up_t = params["w_up"].T                                            # (Cin, 3)

    # Linear -> concat -> kron(att, I3) fused into one (Cin, Cout) matmul.
    # Channel ordering is node-major with xyz inner (ties to the reference view/transpose).
    w_fused = a_big[:cin, :] + jnp.dot(w_up_t, a_big[cin:, :], precision=hp)
    b_fused = jnp.dot(params["b_up"].reshape(1, 3), a_big[cin:, :], precision=hp)  # (1, Cout)

    # residual: cat(y, up) = y @ W_cat + b_cat
    w_cat = jnp.concatenate([jnp.eye(cin, dtype=jnp.float32), w_up_t], axis=1)     # (Cin, Cout)
    b_cat = jnp.concatenate([jnp.zeros((cin,), jnp.float32),
                             params["b_up"]]).reshape(1, cout)                     # (1, Cout)

    # frame mixing for frame-major row stacking (row = f_idx * B + b_idx)
    gw_big = jnp.kron(params["gw"], jnp.eye(b, dtype=jnp.float32))       # (BF, BF)

    def bn_affine(gamma, beta, mean, var, width):
        scale = gamma * lax.rsqrt(var + EPS)
        shift = beta - mean * scale
        return (jnp.repeat(scale.reshape(f, width), b, axis=0),          # (BF, width)
                jnp.repeat(shift.reshape(f, width), b, axis=0))

    s1, t1 = bn_affine(params["bn1_gamma"], params["bn1_beta"],
                       params["bn1_mean"], params["bn1_var"], cin)
    s2, t2 = bn_affine(params["bn2_gamma"], params["bn2_beta"],
                       params["bn2_mean"], params["bn2_var"], cout)

    # fold b_fused + g_bias into the bn2 shift:
    #   (gw_big @ (g1' + 1 b_fused) + g_bias) * s2 + t2 == (gw_big @ g1') * s2 + t2'
    rowsum = jnp.dot(gw_big, jnp.ones((bf, 1), jnp.float32), precision=hp)   # (BF, 1)
    t2p = t2 + s2 * (rowsum * b_fused + params["g_bias"].reshape(1, cout))

    return dict(
        c1=jnp.stack([s1, t1]),                                          # (2, BF, Cin)
        c2=jnp.stack([s2, t2p, jnp.broadcast_to(b_cat, (bf, cout))]),    # (3, BF, Cout)
        w=jnp.stack([w_fused, w_cat]),                                   # (2, Cin, Cout)
        gw_big=gw_big,                                                   # (BF, BF)
    )


def up_forward(x, fused):
    """x: (frame, batch, input_size) float32 -> (frame, batch, input_size + 3)."""
    f, b, cin = x.shape
    cout = cin + 3
    x2d = x.reshape(f * b, cin)                      # frame-major rows: no transpose
    vmem = pl.BlockSpec(memory_space=pltpu.MemorySpace.VMEM)
    out = pl.pallas_call(
        up_kernel,
        out_shape=jax.ShapeDtypeStruct((f * b, cout), jnp.float32),
        in_specs=[vmem] * 5,
        out_specs=vmem,
    )(x2d, fused["c1"], fused["c2"], fused["w"], fused["gw_big"])
    return out.reshape(f, b, cout)                   # frame-major: no transpose


def init_params(key, frame_num, input_size, output_size):
    """Deterministic synthetic parameters matching the PyTorch init rules."""
    node = output_size // 3
    ks = jax.random.split(key, 6)
    adj = jax.random.uniform(ks[0], (node, node), jnp.float32)          # synthetic adjacency
    stdv = 1.0 / (node ** 0.5)
    n1, n2 = input_size * frame_num, output_size * frame_num
    xavier_std = (2.0 / (input_size + 3)) ** 0.5
    return dict(
        # BatchNorm1d #1 / #2 : weight=1, bias=0, running stats (0, 1)
        bn1_gamma=jnp.ones((n1,), jnp.float32), bn1_beta=jnp.zeros((n1,), jnp.float32),
        bn1_mean=jnp.zeros((n1,), jnp.float32), bn1_var=jnp.ones((n1,), jnp.float32),
        bn2_gamma=jnp.ones((n2,), jnp.float32), bn2_beta=jnp.zeros((n2,), jnp.float32),
        bn2_mean=jnp.zeros((n2,), jnp.float32), bn2_var=jnp.ones((n2,), jnp.float32),
        # Linear(input_size -> 3): xavier_normal_, bias = 0.1
        w_up=jax.random.normal(ks[1], (3, input_size), jnp.float32) * xavier_std,
        b_up=jnp.full((3,), 0.1, jnp.float32),
        # GraphConvolution
        gw=jax.random.uniform(ks[2], (frame_num, frame_num), jnp.float32, -stdv, stdv),
        Ap=adj, M=adj,
        Q=jax.random.uniform(ks[3], (node, node), jnp.float32, 0.01, 0.24),
        g_bias=jax.random.uniform(ks[4], (output_size,), jnp.float32, -stdv, stdv),
    )


def reference_forward(x, params):
    """Plain-JAX mirror of the PyTorch forward (eval mode), for validation."""
    f, b, cin = x.shape
    cout = cin + 3
    node = params["Ap"].shape[0]
    hp = jax.lax.Precision.HIGHEST

    def bn(v, g, bt, m, vr):
        return (v - m) / jnp.sqrt(vr + EPS) * g + bt

    y = bn(jnp.transpose(x, (1, 0, 2)).reshape(b, f * cin),
           params["bn1_gamma"], params["bn1_beta"],
           params["bn1_mean"], params["bn1_var"])
    y = jnp.transpose(y.reshape(b, f, cin), (1, 0, 2))                  # (F,B,Cin)
    up = jnp.einsum("fbi,oi->fbo", y, params["w_up"], precision=hp) + params["b_up"]
    out_cat = jnp.concatenate([y, up], axis=2)                          # (F,B,Cout)

    xg = jnp.transpose(out_cat, (1, 0, 2))                              # (B,F,Cout)
    att = params["Ap"] * params["M"] + params["Q"]
    xv = xg.reshape(b, f, node, 3).transpose(0, 1, 3, 2)                # (B,F,3,node)
    g = jnp.einsum("bfdn,nm->bfdm", xv, att, precision=hp)
    g = g.transpose(0, 1, 3, 2).reshape(b, f, cout)
    g = jnp.einsum("fg,bgo->bfo", params["gw"], g, precision=hp) + params["g_bias"]

    z = bn(g.reshape(b, f * cout),
           params["bn2_gamma"], params["bn2_beta"],
           params["bn2_mean"], params["bn2_var"])
    z = jnp.transpose(z.reshape(b, f, cout), (1, 0, 2))
    z = jnp.maximum(z, 0.0)                                             # dropout = identity (eval)
    return z + out_cat


if __name__ == "__main__":
    FRAME, BATCH, IN_SIZE = 8, 2, 45
    OUT_SIZE = IN_SIZE + 3                                              # 48, node = 16

    key = jax.random.PRNGKey(0)
    kx, kp = jax.random.split(key)
    x = jax.random.normal(kx, (FRAME, BATCH, IN_SIZE), jnp.float32)
    params = init_params(kp, FRAME, IN_SIZE, OUT_SIZE)

    # parameter glue: computed once, reused across forward steps
    fused = jax.block_until_ready(prepare_params(params, FRAME, BATCH, IN_SIZE))

    fwd = jax.jit(up_forward)
    y = jax.block_until_ready(fwd(x, fused))

    assert y.shape == (FRAME, BATCH, OUT_SIZE)
    ref = reference_forward(x, params)
    assert jnp.allclose(y, ref, atol=1e-2, rtol=1e-2)

    print("KERNEL_OK")
</pallas_src>

<mosaic_0001>
module attributes {stable_mosaic.version = 11 : i64} {
  func.func @up_kernel(%arg0: memref<16x45xf32, #tpu.memory_space<vmem>>, %arg1: memref<2x16x45xf32, #tpu.memory_space<vmem>>, %arg2: memref<3x16x48xf32, #tpu.memory_space<vmem>>, %arg3: memref<2x45x48xf32, #tpu.memory_space<vmem>>, %arg4: memref<16x16xf32, #tpu.memory_space<vmem>>, %arg5: memref<16x48xf32, #tpu.memory_space<vmem>>) attributes {dimension_semantics = [], scalar_prefetch = 0 : i64, scratch_operands = 0 : i64, tpu.core_type = #tpu.core_type<tc>} {
    %c0 = arith.constant 0 : index
    %c0_0 = arith.constant 0 : index
    %0 = vector.load %arg0[%c0, %c0_0] : memref<16x45xf32, #tpu.memory_space<vmem>>, vector<16x45xf32>
    %c0_1 = arith.constant 0 : index
    %c0_2 = arith.constant 0 : index
    %c0_3 = arith.constant 0 : index
    %1 = vector.load %arg1[%c0_1, %c0_2, %c0_3] : memref<2x16x45xf32, #tpu.memory_space<vmem>>, vector<1x16x45xf32>
    %2 = vector.shape_cast %1 : vector<1x16x45xf32> to vector<16x45xf32>
    %3 = arith.mulf %0, %2 : vector<16x45xf32>
    %c1 = arith.constant 1 : index
    %c0_4 = arith.constant 0 : index
    %c0_5 = arith.constant 0 : index
    %4 = vector.load %arg1[%c1, %c0_4, %c0_5] : memref<2x16x45xf32, #tpu.memory_space<vmem>>, vector<1x16x45xf32>
    %5 = vector.shape_cast %4 : vector<1x16x45xf32> to vector<16x45xf32>
    %6 = arith.addf %3, %5 : vector<16x45xf32>
    %c0_6 = arith.constant 0 : index
    %c0_7 = arith.constant 0 : index
    %c0_8 = arith.constant 0 : index
    %7 = vector.load %arg3[%c0_6, %c0_7, %c0_8] : memref<2x45x48xf32, #tpu.memory_space<vmem>>, vector<1x45x48xf32>
    %8 = vector.shape_cast %7 : vector<1x45x48xf32> to vector<45x48xf32>
    %cst = arith.constant dense<0.000000e+00> : vector<16x48xf32>
    %9 = tpu.matmul %6, %8, %cst {dimension_numbers = #tpu.dot_dimension_numbers<[1], [0], [0], [1], [0, 0, 1, 1], [], []>} : vector<16x45xf32>, vector<45x48xf32>, vector<16x48xf32> -> vector<16x48xf32>
    %c1_9 = arith.constant 1 : index
    %c0_10 = arith.constant 0 : index
    %c0_11 = arith.constant 0 : index
    %10 = vector.load %arg3[%c1_9, %c0_10, %c0_11] : memref<2x45x48xf32, #tpu.memory_space<vmem>>, vector<1x45x48xf32>
    %11 = vector.shape_cast %10 : vector<1x45x48xf32> to vector<45x48xf32>
    %cst_12 = arith.constant dense<0.000000e+00> : vector<16x48xf32>
    %12 = tpu.matmul %6, %11, %cst_12 {dimension_numbers = #tpu.dot_dimension_numbers<[1], [0], [0], [1], [0, 0, 1, 1], [], []>} : vector<16x45xf32>, vector<45x48xf32>, vector<16x48xf32> -> vector<16x48xf32>
    %c0_13 = arith.constant 0 : index
    %c0_14 = arith.constant 0 : index
    %13 = vector.load %arg4[%c0_13, %c0_14] : memref<16x16xf32, #tpu.memory_space<vmem>>, vector<16x16xf32>
    %cst_15 = arith.constant dense<0.000000e+00> : vector<16x48xf32>
    %14 = tpu.matmul %13, %9, %cst_15 {dimension_numbers = #tpu.dot_dimension_numbers<[1], [0], [0], [1], [0, 0, 1, 1], [], []>} : vector<16x16xf32>, vector<16x48xf32>, vector<16x48xf32> -> vector<16x48xf32>
    %c0_16 = arith.constant 0 : index
    %c0_17 = arith.constant 0 : index
    %c0_18 = arith.constant 0 : index
    %15 = vector.load %arg2[%c0_16, %c0_17, %c0_18] : memref<3x16x48xf32, #tpu.memory_space<vmem>>, vector<1x16x48xf32>
    %16 = vector.shape_cast %15 : vector<1x16x48xf32> to vector<16x48xf32>
    %17 = arith.mulf %14, %16 : vector<16x48xf32>
    %c1_19 = arith.constant 1 : index
    %c0_20 = arith.constant 0 : index
    %c0_21 = arith.constant 0 : index
    %18 = vector.load %arg2[%c1_19, %c0_20, %c0_21] : memref<3x16x48xf32, #tpu.memory_space<vmem>>, vector<1x16x48xf32>
    %19 = vector.shape_cast %18 : vector<1x16x48xf32> to vector<16x48xf32>
    %20 = arith.addf %17, %19 : vector<16x48xf32>
    %cst_22 = arith.constant 0.000000e+00 : f32
    %21 = vector.broadcast %cst_22 : f32 to vector<16x48xf32>
    %22 = arith.maximumf %20, %21 : vector<16x48xf32>
    %23 = arith.addf %22, %12 : vector<16x48xf32>
    %c2 = arith.constant 2 : index
    %c0_23 = arith.constant 0 : index
    %c0_24 = arith.constant 0 : index
    %24 = vector.load %arg2[%c2, %c0_23, %c0_24] : memref<3x16x48xf32, #tpu.memory_space<vmem>>, vector<1x16x48xf32>
    %25 = vector.shape_cast %24 : vector<1x16x48xf32> to vector<16x48xf32>
    %26 = arith.addf %23, %25 : vector<16x48xf32>
    %c0_25 = arith.constant 0 : index
    %c0_26 = arith.constant 0 : index
    %27 = vector.load %arg5[%c0_25, %c0_26] : memref<16x48xf32, #tpu.memory_space<vmem>>, vector<16x48xf32>
    tpu.vector_store %arg5[%c0_25, %c0_26], %26 {strides = array<i32>} : memref<16x48xf32, #tpu.memory_space<vmem>>, vector<16x48xf32>,
    return
  }
}

</mosaic_0001>

<llo_original>
// kernel: up_forward.1
$region0: #{up_forward.1}
  #allocation0 [shape = 'u32[]', space=smem, size = 0x4, offset = 0x4, fixed_abs, tag = 'smem constant byte address 0x4 - core index']
  #allocation1 [shape = 'u32[144,128]{1,0:T(1,128)}', space=vmem, size = 0x12000, scoped, tag = 'internal scratch']
  %s0 = inlined_call_operand.vmem [shape: f32[16,45], index: 0, kind: input, shape index: {}]
  %s1 = inlined_call_operand.vmem [shape: f32[2,16,45], index: 1, kind: input, shape index: {}]
  %s2 = inlined_call_operand.vmem [shape: f32[3,16,48], index: 2, kind: input, shape index: {}]
  %s3 = inlined_call_operand.vmem [shape: f32[2,45,48], index: 3, kind: input, shape index: {}]
  %s4 = inlined_call_operand.vmem [shape: f32[16,16], index: 4, kind: input, shape index: {}]
  %s5 = inlined_call_operand.hbm [shape: f32[16,48], index: 5, kind: output, shape index: {}]
  %s6 = sld [smem:[#allocation0]]
  $region30: #{up_forward.1} parent=0
    _
  %s8 = ssub.s32 1, %s6
  %s9 = scalar_select 0, %s8, %s6
  $region1: #{up_forward.1} parent=0
    #allocation2 [shape = 'u8[8192]{0}', space=vmem, size = 0x2000, scoped, tag = 'output window, operand 0, single buffered']
    #allocation3 [shape = 's32[1]{0}', space=sflag, size = 0x4, scoped, tag = 'scoped memory for up_forward.1']
    %10 = vsyncpa [#allocation3], 0
    // Predicated region
    $region2: #{up_forward.1} parent=1 // pred_check
      _
    $region3: #{up_forward.1} parent=1 // pred_check_branch
      %12 = sbr.rel (0) target = $region5
    $region4: #{up_forward.1} parent=1 // pred_region
      _
    $region5: #{up_forward.1} parent=1 // pred_fallthru
      _
    // Predicated region
    $region6: #{up_forward.1} parent=1 // pred_check
      _
    $region7: #{up_forward.1} parent=1 // pred_check_branch
      %14 = sbr.rel (0) target = $region9
    $region8: #{up_forward.1} parent=1 // pred_region
      _
    $region9: #{up_forward.1} parent=1 // pred_fallthru
      _
    // Predicated region
    $region10: #{up_forward.1} parent=1 // pred_check
      _
    $region11: #{up_forward.1} parent=1 // pred_check_branch
      %16 = sbr.rel (0) target = $region13
    $region12: #{up_forward.1} parent=1 // pred_region
      _
    $region13: #{up_forward.1} parent=1 // pred_fallthru
      _
    // Predicated region
    $region14: #{up_forward.1} parent=1 // pred_check
      _
    $region15: #{up_forward.1} parent=1 // pred_check_branch
      %18 = sbr.rel (0) target = $region17
    $region16: #{up_forward.1} parent=1 // pred_region
      _
    $region17: #{up_forward.1} parent=1 // pred_fallthru
      _
    // Predicated region
    $region18: #{up_forward.1} parent=1 // pred_check
      _
    $region19: #{up_forward.1} parent=1 // pred_check_branch
      %20 = sbr.rel (0) target = $region21
    $region20: #{up_forward.1} parent=1 // pred_region
      _
    $region21: #{up_forward.1} parent=1 // pred_fallthru
      _
    %v21 = vld [vmem:[%s0] sm:$0xff]
    %v22 = vld [vmem:[%s0 + $0x8] sm:$0xff]
    %v23 = vld [vmem:[%s1] sm:$0xff]
    %v24 = vld [vmem:[%s1 + $0x8] sm:$0xff]
    %v25 = vmul.f32 %v21, %v23
    %v26 = vmul.f32 %v22, %v24
    %s27 = scalar_lea.vmem %s1, 16
    %v28 = vld [vmem:[%s27] sm:$0xff]
    %v29 = vld [vmem:[%s27 + $0x8] sm:$0xff]
    %v30 = vadd.f32 %v25, %v28
    %v31 = vadd.f32 %v26, %v29
    %v32 = vld [vmem:[%s3] sm:$0xff]
    %v33 = vld [vmem:[%s3 + $0x8] sm:$0xff]
    %v34 = vld [vmem:[%s3 + $0x10] sm:$0xff]
    %v35 = vld [vmem:[%s3 + $0x18] sm:$0xff]
    %v36 = vld [vmem:[%s3 + $0x20] sm:$0xff]
    %v37 = vld [vmem:[%s3 + $0x28] sm:$0x1f]
    %vm38 = vcmask 367616
    %v40 = vsel %vm38, %v30, 0
    %v43 = vsel %vm38, %v31, 0
    %vm45 = vcmask 1044480
    %v47 = vsel %vm45, %v37, 0
    %49 = vmatprep.subr.mxu0 0.0
    %50 = vmatpush1.msra.mxu0 %v32
    %51 = vmatprep.subr.mxu0 0.0
    %52 = vmatpush1.msra.mxu0 %v33
    %53 = vmatprep.subr.mxu0 0.0
    %54 = vmatpush1.msra.mxu0 %v34
    %55 = vmatprep.subr.mxu0 0.0
    %56 = vmatpush1.msra.mxu0 %v35
    %57 = vmatprep.subr.mxu0 0.0
    %58 = vmatpush1.msra.mxu0 %v36
    %59 = vmatprep.subr.mxu0 0.0
    %60 = vmatpush1.msra.mxu0 %v47
    %61 = vmatprep.subr.mxu0 0.0
    %62 = vmatpush1.msra.mxu0 0.0
    %63 = vmatprep.subr.mxu0 0.0
    %64 = vmatpush1.msra.mxu0 0.0
    %65 = vmatprep.subr.mxu0 0.0
    %66 = vmatpush1.msra.mxu0 0.0
    %67 = vmatprep.subr.mxu0 0.0
    %68 = vmatpush1.msra.mxu0 0.0
    %69 = vmatprep.subr.mxu0 0.0
    %70 = vmatpush1.msra.mxu0 0.0
    %71 = vmatprep.subr.mxu0 0.0
    %72 = vmatpush1.msra.mxu0 0.0
    %73 = vmatprep.subr.mxu0 0.0
    %74 = vmatpush1.msra.mxu0 0.0
    %75 = vmatprep.subr.mxu0 0.0
    %76 = vmatpush1.msra.mxu0 0.0
    %77 = vmatprep.subr.mxu0 0.0
    %78 = vmatpush1.msra.mxu0 0.0
    %79 = vmatprep.subr.mxu0 0.0
    %80 = vmatpush1.msra.mxu0 0.0
    %81 = vmatprep.subr.mxu0 0.0
    %82 = vmatpush1.msra.mxu0 0.0
    %83 = vmatprep.subr.mxu0 0.0
    %84 = vmatpush1.msra.mxu0 0.0
    %85 = vmatprep.subr.mxu0 0.0
    %86 = vmatpush1.msra.mxu0 0.0
    %87 = vmatprep.subr.mxu0 0.0
    %88 = vmatpush1.msra.mxu0 0.0
    %89 = vmatprep.subr.mxu0 0.0
    %90 = vmatpush1.msra.mxu0 0.0
    %91 = vmatprep.subr.mxu0 0.0
    %92 = vmatpush1.msra.mxu0 0.0
    %93 = vmatprep.subr.mxu0 0.0
    %94 = vmatpush1.msra.mxu0 0.0
    %95 = vmatprep.subr.mxu0 0.0
    %96 = vmatpush1.msra.mxu0 0.0
    %97 = vmatprep.subr.mxu0 0.0
    %98 = vmatpush1.msra.mxu0 0.0
    %99 = vmatprep.subr.mxu0 0.0
    %100 = vmatpush1.msra.mxu0 0.0
    %101 = vmatprep.subr.mxu0 0.0
    %102 = vmatpush1.msra.mxu0 0.0
    %103 = vmatprep.subr.mxu0 0.0
    %104 = vmatpush1.msra.mxu0 0.0
    %105 = vmatprep.subr.mxu0 0.0
    %106 = vmatpush1.msra.mxu0 0.0
    %107 = vmatprep.subr.mxu0 0.0
    %108 = vmatpush1.msra.mxu0 0.0
    %109 = vmatprep.subr.mxu0 0.0
    %110 = vmatpush1.msra.mxu0 0.0
    %111 = vmatprep.subr.mxu0 0.0
    %112 = vmatpush1.msra.mxu0 0.0
    %113 = vmatprep.mubr.f32.mxu0 0.0
    %114 = vmatmul.mubr.f32.gmra.mrb[0].mxu0 %v40
    %v115 = vpop.f32.mrb[0].mxu0
    %v116 = vadd.f32 0.0, %v115
    %v117 = vpop.f32.mrb[0].mxu0
    %118 = vmatprep.mubr.f32.mxu0 0.0
    %119 = vmatmul.mubr.f32.gmra.mrb[0].mxu0 %v43
    %v120 = vpop.f32.mrb[0].mxu0
    %v121 = vadd.f32 0.0, %v120
    %v122 = vpop.f32.mrb[0].mxu0
    %123 = vdwg.mxu0
    %s124 = scalar_lea.vmem %s3, 48
    %v125 = vld [vmem:[%s124] sm:$0xff]
    %v126 = vld [vmem:[%s124 + $0x8] sm:$0xff]
    %v127 = vld [vmem:[%s124 + $0x10] sm:$0xff]
    %v128 = vld [vmem:[%s124 + $0x18] sm:$0xff]
    %v129 = vld [vmem:[%s124 + $0x20] sm:$0xff]
    %v130 = vld [vmem:[%s124 + $0x28] sm:$0x1f]
    %v132 = vsel %vm45, %v130, 0
    %134 = vmatprep.subr.mxu0 0.0
    %135 = vmatpush1.msra.mxu0 %v125
    %136 = vmatprep.subr.mxu0 0.0
    %137 = vmatpush1.msra.mxu0 %v126
    %138 = vmatprep.subr.mxu0 0.0
    %139 = vmatpush1.msra.mxu0 %v127
    %140 = vmatprep.subr.mxu0 0.0
    %141 = vmatpush1.msra.mxu0 %v128
    %142 = vmatprep.subr.mxu0 0.0
    %143 = vmatpush1.msra.mxu0 %v129
    %144 = vmatprep.subr.mxu0 0.0
    %145 = vmatpush1.msra.mxu0 %v132
    %146 = vmatprep.subr.mxu0 0.0
    %147 = vmatpush1.msra.mxu0 0.0
    %148 = vmatprep.subr.mxu0 0.0
    %149 = vmatpush1.msra.mxu0 0.0
    %150 = vmatprep.subr.mxu0 0.0
    %151 = vmatpush1.msra.mxu0 0.0
    %152 = vmatprep.subr.mxu0 0.0
    %153 = vmatpush1.msra.mxu0 0.0
    %154 = vmatprep.subr.mxu0 0.0
    %155 = vmatpush1.msra.mxu0 0.0
    %156 = vmatprep.subr.mxu0 0.0
    %157 = vmatpush1.msra.mxu0 0.0
    %158 = vmatprep.subr.mxu0 0.0
    %159 = vmatpush1.msra.mxu0 0.0
    %160 = vmatprep.subr.mxu0 0.0
    %161 = vmatpush1.msra.mxu0 0.0
    %162 = vmatprep.subr.mxu0 0.0
    %163 = vmatpush1.msra.mxu0 0.0
    %164 = vmatprep.subr.mxu0 0.0
    %165 = vmatpush1.msra.mxu0 0.0
    %166 = vmatprep.subr.mxu0 0.0
    %167 = vmatpush1.msra.mxu0 0.0
    %168 = vmatprep.subr.mxu0 0.0
    %169 = vmatpush1.msra.mxu0 0.0
    %170 = vmatprep.subr.mxu0 0.0
    %171 = vmatpush1.msra.mxu0 0.0
    %172 = vmatprep.subr.mxu0 0.0
    %173 = vmatpush1.msra.mxu0 0.0
    %174 = vmatprep.subr.mxu0 0.0
    %175 = vmatpush1.msra.mxu0 0.0
    %176 = vmatprep.subr.mxu0 0.0
    %177 = vmatpush1.msra.mxu0 0.0
    %178 = vmatprep.subr.mxu0 0.0
    %179 = vmatpush1.msra.mxu0 0.0
    %180 = vmatprep.subr.mxu0 0.0
    %181 = vmatpush1.msra.mxu0 0.0
    %182 = vmatprep.subr.mxu0 0.0
    %183 = vmatpush1.msra.mxu0 0.0
    %184 = vmatprep.subr.mxu0 0.0
    %185 = vmatpush1.msra.mxu0 0.0
    %186 = vmatprep.subr.mxu0 0.0
    %187 = vmatpush1.msra.mxu0 0.0
    %188 = vmatprep.subr.mxu0 0.0
    %189 = vmatpush1.msra.mxu0 0.0
    %190 = vmatprep.subr.mxu0 0.0
    %191 = vmatpush1.msra.mxu0 0.0
    %192 = vmatprep.subr.mxu0 0.0
    %193 = vmatpush1.msra.mxu0 0.0
    %194 = vmatprep.subr.mxu0 0.0
    %195 = vmatpush1.msra.mxu0 0.0
    %196 = vmatprep.subr.mxu0 0.0
    %197 = vmatpush1.msra.mxu0 0.0
    %198 = vmatprep.mubr.f32.mxu0 0.0
    %199 = vmatmul.mubr.f32.gmra.mrb[0].mxu0 %v40
    %v200 = vpop.f32.mrb[0].mxu0
    %v201 = vadd.f32 0.0, %v200
    %v202 = vpop.f32.mrb[0].mxu0
    %203 = vmatprep.mubr.f32.mxu0 0.0
    %204 = vmatmul.mubr.f32.gmra.mrb[0].mxu0 %v43
    %v205 = vpop.f32.mrb[0].mxu0
    %v206 = vadd.f32 0.0, %v205
    %v207 = vpop.f32.mrb[0].mxu0
    %208 = vdwg.mxu0
    %v209 = vld [vmem:[%s4] sm:$0xff]
    %v210 = vld [vmem:[%s4 + $0x8] sm:$0xff]
    %vm211 = vcmask 130048
    %v213 = vsel %vm211, %v209, 0
    %v216 = vsel %vm211, %v210, 0
    %218 = vmatprep.subr.mxu0 0.0
    %219 = vmatpush1.msra.mxu0 %v116
    %220 = vmatprep.subr.mxu0 0.0
    %221 = vmatpush1.msra.mxu0 %v121
    %222 = vmatprep.subr.mxu0 0.0
    %223 = vmatpush1.msra.mxu0 0.0
    %224 = vmatprep.subr.mxu0 0.0
    %225 = vmatpush1.msra.mxu0 0.0
    %226 = vmatprep.subr.mxu0 0.0
    %227 = vmatpush1.msra.mxu0 0.0
    %228 = vmatprep.subr.mxu0 0.0
    %229 = vmatpush1.msra.mxu0 0.0
    %230 = vmatprep.subr.mxu0 0.0
    %231 = vmatpush1.msra.mxu0 0.0
    %232 = vmatprep.subr.mxu0 0.0
    %233 = vmatpush1.msra.mxu0 0.0
    %234 = vmatprep.subr.mxu0 0.0
    %235 = vmatpush1.msra.mxu0 0.0
    %236 = vmatprep.subr.mxu0 0.0
    %237 = vmatpush1.msra.mxu0 0.0
    %238 = vmatprep.subr.mxu0 0.0
    %239 = vmatpush1.msra.mxu0 0.0
    %240 = vmatprep.subr.mxu0 0.0
    %241 = vmatpush1.msra.mxu0 0.0
    %242 = vmatprep.subr.mxu0 0.0
    %243 = vmatpush1.msra.mxu0 0.0
    %244 = vmatprep.subr.mxu0 0.0
    %245 = vmatpush1.msra.mxu0 0.0
    %246 = vmatprep.subr.mxu0 0.0
    %247 = vmatpush1.msra.mxu0 0.0
    %248 = vmatprep.subr.mxu0 0.0
    %249 = vmatpush1.msra.mxu0 0.0
    %250 = vmatprep.subr.mxu0 0.0
    %251 = vmatpush1.msra.mxu0 0.0
    %252 = vmatprep.subr.mxu0 0.0
    %253 = vmatpush1.msra.mxu0 0.0
    %254 = vmatprep.subr.mxu0 0.0
    %255 = vmatpush1.msra.mxu0 0.0
    %256 = vmatprep.subr.mxu0 0.0
    %257 = vmatpush1.msra.mxu0 0.0
    %258 = vmatprep.subr.mxu0 0.0
    %259 = vmatpush1.msra.mxu0 0.0
    %260 = vmatprep.subr.mxu0 0.0
    %261 = vmatpush1.msra.mxu0 0.0
    %262 = vmatprep.subr.mxu0 0.0
    %263 = vmatpush1.msra.mxu0 0.0
    %264 = vmatprep.subr.mxu0 0.0
    %265 = vmatpush1.msra.mxu0 0.0
    %266 = vmatprep.subr.mxu0 0.0
    %267 = vmatpush1.msra.mxu0 0.0
    %268 = vmatprep.subr.mxu0 0.0
    %269 = vmatpush1.msra.mxu0 0.0
    %270 = vmatprep.subr.mxu0 0.0
    %271 = vmatpush1.msra.mxu0 0.0
    %272 = vmatprep.subr.mxu0 0.0
    %273 = vmatpush1.msra.mxu0 0.0
    %274 = vmatprep.subr.mxu0 0.0
    %275 = vmatpush1.msra.mxu0 0.0
    %276 = vmatprep.subr.mxu0 0.0
    %277 = vmatpush1.msra.mxu0 0.0
    %278 = vmatprep.subr.mxu0 0.0
    %279 = vmatpush1.msra.mxu0 0.0
    %280 = vmatprep.subr.mxu0 0.0
    %281 = vmatpush1.msra.mxu0 0.0
    %282 = vmatprep.mubr.f32.mxu0 0.0
    %283 = vmatmul.mubr.f32.gmra.mrb[0].mxu0 %v213
    %v284 = vpop.f32.mrb[0].mxu0
    %v285 = vadd.f32 0.0, %v284
    %v286 = vpop.f32.mrb[0].mxu0
    %287 = vmatprep.mubr.f32.mxu0 0.0
    %288 = vmatmul.mubr.f32.gmra.mrb[0].mxu0 %v216
    %v289 = vpop.f32.mrb[0].mxu0
    %v290 = vadd.f32 0.0, %v289
    %v291 = vpop.f32.mrb[0].mxu0
    %292 = vdwg.mxu0
    %v293 = vld [vmem:[%s2] sm:$0xff]
    %v294 = vld [vmem:[%s2 + $0x8] sm:$0xff]
    %v295 = vmul.f32 %v285, %v293
    %v296 = vmul.f32 %v290, %v294
    %s297 = scalar_lea.vmem %s2, 16
    %v298 = vld [vmem:[%s297] sm:$0xff]
    %v299 = vld [vmem:[%s297 + $0x8] sm:$0xff]
    %v300 = vadd.f32 %v295, %v298
    %v301 = vadd.f32 %v296, %v299
    %v302 = vmax.f32 %v300, 0.0
    %v303 = vmax.f32 %v301, 0.0
    %v304 = vadd.f32 %v302, %v201
    %v305 = vadd.f32 %v303, %v206
    %s306 = scalar_lea.vmem %s2, 32
    %v307 = vld [vmem:[%s306] sm:$0xff]
    %v308 = vld [vmem:[%s306 + $0x8] sm:$0xff]
    %v309 = vadd.f32 %v304, %v307
    %v310 = vadd.f32 %v305, %v308
    %vm311 = vcmask 392192
    %312 = vst.msk [vmem:[#allocation2] sm:$0xff] %vm311, %v309
    %313 = vst.msk [vmem:[#allocation2 + $0x8] sm:$0xff] %vm311, %v310
    // Predicated region
    $region22: #{up_forward.1} parent=1 // pred_check
      _
    $region23: #{up_forward.1} parent=1 // pred_check_branch
      %315 = sbr.rel (0) target = $region25
    $region24: #{up_forward.1} parent=1 // pred_region
      %s317 = ssub.s32 256, 256
      %318 = vsyncadd [#allocation3], %s317
      %s319 = sshll.u32 [#allocation2], 4
      %s320 = int_to_ptr.vmem [resolvable:$true] %s319
      %325 = dma.vmem_to_hbm [thread:$0]  %s320, 256, %s5, [#allocation3], 128, 128, 8
    $region25: #{up_forward.1} parent=1 // pred_fallthru
      _
    // Predicated region
    $region26: #{up_forward.1} parent=1 // pred_check
      _
    $region27: #{up_forward.1} parent=1 // pred_check_branch
      %327 = sbr.rel (0) target = $region29
    $region28: #{up_forward.1} parent=1 // pred_region
      %328 = dma.done [#allocation3], 256
    $region29: #{up_forward.1} parent=1 // pred_fallthru
      _
    %329 = vsyncpa [#allocation3], 1

</llo_original>
